<compile_context>
chip_gen: v7x
topology: tpu7x:2x2x1
jax: 0.10.0
libtpu: 0.0.40
codegen_flags: <defaults>
</compile_context>

<pallas_src>
import functools

import jax
import jax.numpy as jnp
from jax import lax
from jax.experimental import pallas as pl
from jax.experimental.pallas import tpu as pltpu

BN_EPS = 1e-5
SOFTPLUS_THRESHOLD = 20.0  # PyTorch nn.Softplus default threshold
LANE = 128
SUBLANE = 8


def _round_up(x, m):
    return (x + m - 1) // m * m


def _softplus(x):
    # PyTorch Softplus(beta=1): log(1 + exp(x)), linear for x > threshold.
    safe_x = jnp.minimum(x, SOFTPLUS_THRESHOLD)
    return jnp.where(x > SOFTPLUS_THRESHOLD, x, jnp.log1p(jnp.exp(safe_x)))


def _mlp_head(x, refs, idx, num_act_layers):
    """Softplus MLP followed by the fused (mu|sigma) head matmul (no batch-norm)."""
    h = x
    for _ in range(num_act_layers):
        w = refs[idx][...]
        b = refs[idx + 1][...]
        idx += 2
        h = _softplus(jnp.dot(h, w, preferred_element_type=jnp.float32) + b)
    # dropout_enc -> identity (deterministic / eval semantics)
    # TODO(synk): stochastic training-mode dropout omitted (identity used).
    w_head = refs[idx][...]
    b_head = refs[idx + 1][...]
    idx += 2
    y = jnp.dot(h, w_head, preferred_element_type=jnp.float32) + b_head
    return y, idx


# ---------------------------------------------------------------------------
# Fast path: whole (padded) batch fits in one tile -> single fused kernel.
# ---------------------------------------------------------------------------
def _fused_kernel(n_valid, n_rows, num_act_layers, *refs):
    x = refs[0][...]
    y, idx = _mlp_head(x, refs, 1, num_act_layers)
    out_ref = refs[idx]
    if n_valid == n_rows:
        mean = jnp.mean(y, axis=0, keepdims=True)
        var = jnp.mean((y - mean) ** 2, axis=0, keepdims=True)
    else:
        rows = lax.broadcasted_iota(jnp.int32, y.shape, 0)
        valid = rows < n_valid
        inv_n = 1.0 / n_valid
        ym = jnp.where(valid, y, 0.0)
        mean = jnp.sum(ym, axis=0, keepdims=True) * inv_n
        var = jnp.sum(jnp.where(valid, (y - mean) ** 2, 0.0),
                      axis=0, keepdims=True) * inv_n
    out_ref[...] = (y - mean) * lax.rsqrt(var + BN_EPS)


# ---------------------------------------------------------------------------
# Tiled path, pass 1: MLP + fused head per batch tile, plus per-tile partial
# column sums / sums-of-squares (padded rows masked out of the statistics).
# ---------------------------------------------------------------------------
def _mlp_head_stats_kernel(n_valid, n_rows, tile_rows, num_act_layers, *refs):
    x = refs[0][...]
    y, idx = _mlp_head(x, refs, 1, num_act_layers)
    y_ref, psum_ref, psumsq_ref = refs[idx], refs[idx + 1], refs[idx + 2]
    y_ref[...] = y
    if n_valid == n_rows:
        ym = y
    else:
        i = pl.program_id(0)
        rows = i * tile_rows + lax.broadcasted_iota(jnp.int32, y.shape, 0)
        ym = jnp.where(rows < n_valid, y, 0.0)
    psum_ref[...] = jnp.sum(ym, axis=0, keepdims=True).reshape(1, 1, -1)
    psumsq_ref[...] = jnp.sum(ym * ym, axis=0, keepdims=True).reshape(1, 1, -1)


# ---------------------------------------------------------------------------
# Tiled path, pass 2: normalize each tile with the full-batch statistics.
# ---------------------------------------------------------------------------
def _batchnorm_kernel(n_valid, y_ref, sum_ref, sumsq_ref, out_ref):
    inv_n = 1.0 / n_valid
    mean = sum_ref[...] * inv_n
    var = jnp.maximum(sumsq_ref[...] * inv_n - mean * mean, 0.0)
    out_ref[...] = (y_ref[...] - mean) * lax.rsqrt(var + BN_EPS)


# ---------------------------------------------------------------------------
# Wrapper
# ---------------------------------------------------------------------------
def _pad_linear(w, b):
    """Zero-pad (in, out) weights / (1, out) bias to 128-lane multiples."""
    fi, fo = w.shape
    fi_p, fo_p = _round_up(fi, LANE), _round_up(fo, LANE)
    w_p = jnp.zeros((fi_p, fo_p), jnp.float32).at[:fi, :fo].set(
        w.astype(jnp.float32))
    b_p = jnp.zeros((1, fo_p), jnp.float32).at[:, :fo].set(
        b.reshape(1, fo).astype(jnp.float32))
    return w_p, b_p


def _cost_estimate(n_rows, padded_layers):
    flops, bytes_acc, trans = 0, 0, 0
    for k, (w, b) in enumerate(padded_layers):
        fi, fo = w.shape
        flops += 2 * n_rows * fi * fo
        bytes_acc += 4 * (w.size + b.size)
        if k < len(padded_layers) - 1:
            trans += n_rows * fo  # exp in softplus
    bytes_acc += 4 * n_rows * padded_layers[0][0].shape[0]   # x
    bytes_acc += 4 * n_rows * padded_layers[-1][0].shape[1]  # head output
    return pl.CostEstimate(flops=int(flops), transcendentals=int(trans),
                           bytes_accessed=int(bytes_acc))


def inference_network_forward(x, params, *, max_tile_rows=512):
    """Returns (mu, log_sigma).

    dropout_enc is identity (eval semantics); BatchNorm1d(affine=False) uses
    per-call batch statistics (biased variance, eps=1e-5), matching the PyTorch
    module's training-mode normalization in `forward`.
    """
    B, F_in = x.shape
    out_size = params["mu"][0].shape[1]
    num_hidden = len(params["hiddens"])
    num_act_layers = num_hidden + 1  # input layer + hidden layers, each + softplus

    # Fuse mu / sigma heads into one lane-dense matmul + one batch-norm.
    w_mu, b_mu = params["mu"]
    w_sig, b_sig = params["sigma"]
    w_head = jnp.concatenate([w_mu, w_sig], axis=1)
    b_head = jnp.concatenate([b_mu.reshape(1, -1), b_sig.reshape(1, -1)], axis=1)

    # Zero-pad every feature dim to a multiple of 128 lanes (exact same math).
    layer_wb = [params["input"], *params["hiddens"], (w_head, b_head)]
    padded = [_pad_linear(w, b) for (w, b) in layer_wb]
    flat_params = []
    for w, b in padded:
        flat_params += [w, b]

    f_in_pad = padded[0][0].shape[0]
    f_out_pad = padded[-1][0].shape[1]

    # Batch tiling: big row tiles amortize launch/DMA overhead; weights stay
    # VMEM-resident across grid steps.
    tile_rows = min(_round_up(B, SUBLANE), _round_up(max_tile_rows, SUBLANE))
    B_pad = _round_up(B, tile_rows)
    num_tiles = B_pad // tile_rows

    xp = jnp.zeros((B_pad, f_in_pad), jnp.float32).at[:B, :F_in].set(
        x.astype(jnp.float32))

    vmem = pl.BlockSpec(memory_space=pltpu.MemorySpace.VMEM)
    cost = _cost_estimate(B_pad, padded)

    if num_tiles == 1:
        # Whole padded batch in one tile: single fused kernel, BN in-kernel.
        kernel = functools.partial(_fused_kernel, B, B_pad, num_act_layers)
        y = pl.pallas_call(
            kernel,
            out_shape=jax.ShapeDtypeStruct((B_pad, f_out_pad), jnp.float32),
            in_specs=[vmem] * (1 + len(flat_params)),
            out_specs=vmem,
            cost_estimate=cost,
        )(xp, *flat_params)
    else:
        # Pass 1: batch-tiled MLP + fused head + per-tile partial BN statistics.
        kernel_a = functools.partial(
            _mlp_head_stats_kernel, B, B_pad, tile_rows, num_act_layers)
        weight_specs = [pl.BlockSpec(p.shape, lambda i: (0, 0))
                        for p in flat_params]
        y_lin, psum, psumsq = pl.pallas_call(
            kernel_a,
            grid=(num_tiles,),
            out_shape=(
                jax.ShapeDtypeStruct((B_pad, f_out_pad), jnp.float32),
                jax.ShapeDtypeStruct((num_tiles, 1, f_out_pad), jnp.float32),
                jax.ShapeDtypeStruct((num_tiles, 1, f_out_pad), jnp.float32),
            ),
            in_specs=[pl.BlockSpec((tile_rows, f_in_pad), lambda i: (i, 0))]
                     + weight_specs,
            out_specs=(
                pl.BlockSpec((tile_rows, f_out_pad), lambda i: (i, 0)),
                pl.BlockSpec((1, 1, f_out_pad), lambda i: (i, 0, 0)),
                pl.BlockSpec((1, 1, f_out_pad), lambda i: (i, 0, 0)),
            ),
            compiler_params=pltpu.CompilerParams(
                dimension_semantics=("parallel",)),
            cost_estimate=cost,
        )(xp, *flat_params)

        col_sum = jnp.sum(psum, axis=0)      # (1, f_out_pad)
        col_sumsq = jnp.sum(psumsq, axis=0)  # (1, f_out_pad)

        # Pass 2: normalize every tile with the full-batch statistics.
        kernel_b = functools.partial(_batchnorm_kernel, B)
        y = pl.pallas_call(
            kernel_b,
            grid=(num_tiles,),
            out_shape=jax.ShapeDtypeStruct((B_pad, f_out_pad), jnp.float32),
            in_specs=[
                pl.BlockSpec((tile_rows, f_out_pad), lambda i: (i, 0)),
                pl.BlockSpec((1, f_out_pad), lambda i: (0, 0)),
                pl.BlockSpec((1, f_out_pad), lambda i: (0, 0)),
            ],
            out_specs=pl.BlockSpec((tile_rows, f_out_pad), lambda i: (i, 0)),
            compiler_params=pltpu.CompilerParams(
                dimension_semantics=("parallel",)),
        )(y_lin, col_sum, col_sumsq)

    mu = y[:B, :out_size]
    log_sigma = y[:B, out_size:2 * out_size]
    return mu, log_sigma


# ---------------------------------------------------------------------------
# Reference + params + demo
# ---------------------------------------------------------------------------
def reference_forward(x, params):
    """Pure-JAX reference with identical (eval dropout / batch-stat BN) semantics."""
    def bn(v):
        mean = jnp.mean(v, axis=0, keepdims=True)
        var = jnp.mean((v - mean) ** 2, axis=0, keepdims=True)
        return (v - mean) / jnp.sqrt(var + BN_EPS)

    w, b = params["input"]
    h = jax.nn.softplus(x @ w + b)
    for w, b in params["hiddens"]:
        h = jax.nn.softplus(h @ w + b)
    w_mu, b_mu = params["mu"]
    w_sig, b_sig = params["sigma"]
    return bn(h @ w_mu + b_mu), bn(h @ w_sig + b_sig)


def init_params(key, input_size, output_size, hidden_sizes):
    """Deterministic synthetic parameter init (uniform, PyTorch-Linear-like scale)."""
    def linear(key, fan_in, fan_out):
        k_w, k_b = jax.random.split(key)
        bound = 1.0 / jnp.sqrt(fan_in)
        w = jax.random.uniform(k_w, (fan_in, fan_out), jnp.float32, -bound, bound)
        b = jax.random.uniform(k_b, (1, fan_out), jnp.float32, -bound, bound)
        return w, b

    keys = jax.random.split(key, len(hidden_sizes) + 3)
    params = {"input": linear(keys[0], input_size, hidden_sizes[0])}
    hiddens = []
    for i, (h_in, h_out) in enumerate(zip(hidden_sizes[:-1], hidden_sizes[1:])):
        hiddens.append(linear(keys[1 + i], h_in, h_out))
    params["hiddens"] = hiddens
    params["mu"] = linear(keys[-2], hidden_sizes[-1], output_size)
    params["sigma"] = linear(keys[-1], hidden_sizes[-1], output_size)
    return params


if __name__ == "__main__":
    input_size, output_size, hidden_sizes = 32, 16, (64, 64)
    key = jax.random.PRNGKey(0)
    k_p, k_x1, k_x2 = jax.random.split(key, 3)
    params = init_params(k_p, input_size, output_size, hidden_sizes)

    def check(a, b, name):
        err = float(jnp.max(jnp.abs(a - b)))
        assert err < 5e-2, f"{name}: max abs err {err}"

    # Case 1: small batch -> single fused kernel (no grid).
    x1 = jax.random.normal(k_x1, (8, input_size), dtype=jnp.float32)
    mu1, ls1 = inference_network_forward(x1, params)
    jax.block_until_ready((mu1, ls1))
    assert mu1.shape == (8, output_size) and ls1.shape == (8, output_size)
    r_mu1, r_ls1 = reference_forward(x1, params)
    check(mu1, r_mu1, "mu (fused)")
    check(ls1, r_ls1, "log_sigma (fused)")

    # Case 2: ragged batch with a forced small tile -> batch-tiled two-pass path.
    x2 = jax.random.normal(k_x2, (20, input_size), dtype=jnp.float32)
    mu2, ls2 = inference_network_forward(x2, params, max_tile_rows=8)
    jax.block_until_ready((mu2, ls2))
    assert mu2.shape == (20, output_size) and ls2.shape == (20, output_size)
    r_mu2, r_ls2 = reference_forward(x2, params)
    check(mu2, r_mu2, "mu (tiled)")
    check(ls2, r_ls2, "log_sigma (tiled)")

    print("KERNEL_OK")
</pallas_src>

<mosaic_0001>
module attributes {stable_mosaic.version = 11 : i64} {
  func.func @_fused_kernel(%arg0: memref<8x128xf32, #tpu.memory_space<vmem>>, %arg1: memref<128x128xf32, #tpu.memory_space<vmem>>, %arg2: memref<1x128xf32, #tpu.memory_space<vmem>>, %arg3: memref<128x128xf32, #tpu.memory_space<vmem>>, %arg4: memref<1x128xf32, #tpu.memory_space<vmem>>, %arg5: memref<128x128xf32, #tpu.memory_space<vmem>>, %arg6: memref<1x128xf32, #tpu.memory_space<vmem>>, %arg7: memref<8x128xf32, #tpu.memory_space<vmem>>) attributes {dimension_semantics = [], scalar_prefetch = 0 : i64, scratch_operands = 0 : i64, tpu.core_type = #tpu.core_type<tc>} {
    %c0 = arith.constant 0 : index
    %c0_0 = arith.constant 0 : index
    %0 = vector.load %arg0[%c0, %c0_0] : memref<8x128xf32, #tpu.memory_space<vmem>>, vector<8x128xf32>
    %c0_1 = arith.constant 0 : index
    %c0_2 = arith.constant 0 : index
    %1 = vector.load %arg1[%c0_1, %c0_2] : memref<128x128xf32, #tpu.memory_space<vmem>>, vector<128x128xf32>
    %c0_3 = arith.constant 0 : index
    %c0_4 = arith.constant 0 : index
    %2 = vector.load %arg2[%c0_3, %c0_4] : memref<1x128xf32, #tpu.memory_space<vmem>>, vector<1x128xf32>
    %cst = arith.constant dense<0.000000e+00> : vector<8x128xf32>
    %3 = tpu.matmul %0, %1, %cst {dimension_numbers = #tpu.dot_dimension_numbers<[1], [0], [0], [1], [0, 0, 1, 1], [], []>} : vector<8x128xf32>, vector<128x128xf32>, vector<8x128xf32> -> vector<8x128xf32>
    %4 = vector.broadcast %2 : vector<1x128xf32> to vector<8x128xf32>
    %5 = arith.addf %3, %4 : vector<8x128xf32>
    %cst_5 = arith.constant 2.000000e+01 : f32
    %6 = vector.broadcast %cst_5 : f32 to vector<8x128xf32>
    %7 = arith.minimumf %5, %6 : vector<8x128xf32>
    %cst_6 = arith.constant 2.000000e+01 : f32
    %8 = vector.broadcast %cst_6 : f32 to vector<8x128xf32>
    %9 = arith.cmpf ogt, %5, %8 : vector<8x128xf32>
    %10 = math.exp %7 : vector<8x128xf32>
    %11 = math.log1p %10 : vector<8x128xf32>
    %12 = arith.select %9, %5, %11 : vector<8x128xi1>, vector<8x128xf32>
    %c0_7 = arith.constant 0 : index
    %c0_8 = arith.constant 0 : index
    %13 = vector.load %arg3[%c0_7, %c0_8] : memref<128x128xf32, #tpu.memory_space<vmem>>, vector<128x128xf32>
    %c0_9 = arith.constant 0 : index
    %c0_10 = arith.constant 0 : index
    %14 = vector.load %arg4[%c0_9, %c0_10] : memref<1x128xf32, #tpu.memory_space<vmem>>, vector<1x128xf32>
    %cst_11 = arith.constant dense<0.000000e+00> : vector<8x128xf32>
    %15 = tpu.matmul %12, %13, %cst_11 {dimension_numbers = #tpu.dot_dimension_numbers<[1], [0], [0], [1], [0, 0, 1, 1], [], []>} : vector<8x128xf32>, vector<128x128xf32>, vector<8x128xf32> -> vector<8x128xf32>
    %16 = vector.broadcast %14 : vector<1x128xf32> to vector<8x128xf32>
    %17 = arith.addf %15, %16 : vector<8x128xf32>
    %cst_12 = arith.constant 2.000000e+01 : f32
    %18 = vector.broadcast %cst_12 : f32 to vector<8x128xf32>
    %19 = arith.minimumf %17, %18 : vector<8x128xf32>
    %cst_13 = arith.constant 2.000000e+01 : f32
    %20 = vector.broadcast %cst_13 : f32 to vector<8x128xf32>
    %21 = arith.cmpf ogt, %17, %20 : vector<8x128xf32>
    %22 = math.exp %19 : vector<8x128xf32>
    %23 = math.log1p %22 : vector<8x128xf32>
    %24 = arith.select %21, %17, %23 : vector<8x128xi1>, vector<8x128xf32>
    %c0_14 = arith.constant 0 : index
    %c0_15 = arith.constant 0 : index
    %25 = vector.load %arg5[%c0_14, %c0_15] : memref<128x128xf32, #tpu.memory_space<vmem>>, vector<128x128xf32>
    %c0_16 = arith.constant 0 : index
    %c0_17 = arith.constant 0 : index
    %26 = vector.load %arg6[%c0_16, %c0_17] : memref<1x128xf32, #tpu.memory_space<vmem>>, vector<1x128xf32>
    %cst_18 = arith.constant dense<0.000000e+00> : vector<8x128xf32>
    %27 = tpu.matmul %24, %25, %cst_18 {dimension_numbers = #tpu.dot_dimension_numbers<[1], [0], [0], [1], [0, 0, 1, 1], [], []>} : vector<8x128xf32>, vector<128x128xf32>, vector<8x128xf32> -> vector<8x128xf32>
    %28 = vector.broadcast %26 : vector<1x128xf32> to vector<8x128xf32>
    %29 = arith.addf %27, %28 : vector<8x128xf32>
    %cst_19 = arith.constant dense<0.000000e+00> : vector<128xf32>
    %30 = vector.multi_reduction <add>, %29, %cst_19 [0] : vector<8x128xf32> to vector<128xf32>
    %31 = vector.shape_cast %30 : vector<128xf32> to vector<1x128xf32>
    %cst_20 = arith.constant 8.000000e+00 : f32
    %32 = vector.broadcast %cst_20 : f32 to vector<1x128xf32>
    %33 = arith.divf %31, %32 : vector<1x128xf32>
    %34 = vector.broadcast %33 : vector<1x128xf32> to vector<8x128xf32>
    %35 = arith.subf %29, %34 : vector<8x128xf32>
    %36 = arith.mulf %35, %35 : vector<8x128xf32>
    %cst_21 = arith.constant dense<0.000000e+00> : vector<128xf32>
    %37 = vector.multi_reduction <add>, %36, %cst_21 [0] : vector<8x128xf32> to vector<128xf32>
    %38 = vector.shape_cast %37 : vector<128xf32> to vector<1x128xf32>
    %cst_22 = arith.constant 8.000000e+00 : f32
    %39 = vector.broadcast %cst_22 : f32 to vector<1x128xf32>
    %40 = arith.divf %38, %39 : vector<1x128xf32>
    %41 = vector.broadcast %33 : vector<1x128xf32> to vector<8x128xf32>
    %42 = arith.subf %29, %41 : vector<8x128xf32>
    %cst_23 = arith.constant 9.99999974E-6 : f32
    %43 = vector.broadcast %cst_23 : f32 to vector<1x128xf32>
    %44 = arith.addf %40, %43 : vector<1x128xf32>
    %45 = math.rsqrt %44 : vector<1x128xf32>
    %46 = vector.broadcast %45 : vector<1x128xf32> to vector<8x128xf32>
    %47 = arith.mulf %42, %46 : vector<8x128xf32>
    %c0_24 = arith.constant 0 : index
    %c0_25 = arith.constant 0 : index
    %48 = vector.load %arg7[%c0_24, %c0_25] : memref<8x128xf32, #tpu.memory_space<vmem>>, vector<8x128xf32>
    tpu.vector_store %arg7[%c0_24, %c0_25], %47 {strides = array<i32>} : memref<8x128xf32, #tpu.memory_space<vmem>>, vector<8x128xf32>,
    return
  }
}

</mosaic_0001>

<llo_original>
// kernel: tpu_custom_call.1
$region0: #{tpu_custom_call.1}
  #allocation0 [shape = 'u32[]', space=smem, size = 0x4, offset = 0x4, fixed_abs, tag = 'smem constant byte address 0x4 - core index']
  #allocation1 [shape = 'u32[144,128]{1,0:T(1,128)}', space=vmem, size = 0x12000, scoped, tag = 'internal scratch']
  %s0 = inlined_call_operand.hbm [shape: f32[8,128], index: 0, kind: input, shape index: {}]
  %s1 = inlined_call_operand.hbm [shape: f32[128,128], index: 1, kind: input, shape index: {}]
  %s2 = inlined_call_operand.vmem [shape: f32[1,128], index: 2, kind: input, shape index: {}]
  %s3 = inlined_call_operand.hbm [shape: f32[128,128], index: 3, kind: input, shape index: {}]
  %s4 = inlined_call_operand.vmem [shape: f32[1,128], index: 4, kind: input, shape index: {}]
  %s5 = inlined_call_operand.hbm [shape: f32[128,128], index: 5, kind: input, shape index: {}]
  %s6 = inlined_call_operand.vmem [shape: f32[1,128], index: 6, kind: input, shape index: {}]
  %s7 = inlined_call_operand.hbm [shape: f32[8,128], index: 7, kind: output, shape index: {}]
  %s8 = sld [smem:[#allocation0]]
  $region54: #{tpu_custom_call.1} parent=0
    _
  %s10 = ssub.s32 1, %s8
  %s11 = scalar_select 0, %s10, %s8
  $region1: #{tpu_custom_call.1} parent=0
    #allocation2 [shape = 'u8[4096]{0}', space=vmem, size = 0x1000, scoped, tag = 'input window, operand 0, single buffered']
    #allocation3 [shape = 's32[1]{0}', space=sflag, size = 0x4, scoped, tag = 'scoped memory for tpu_custom_call.1']
    #allocation4 [shape = 's32[1]{0}', space=sflag, size = 0x4, scoped, tag = 'scoped memory for tpu_custom_call.1']
    #allocation5 [shape = 'u8[65536]{0}', space=vmem, size = 0x10000, scoped, tag = 'input window, operand 1, single buffered']
    #allocation6 [shape = 's32[1]{0}', space=sflag, size = 0x4, scoped, tag = 'scoped memory for tpu_custom_call.1']
    #allocation7 [shape = 'u8[65536]{0}', space=vmem, size = 0x10000, scoped, tag = 'input window, operand 3, single buffered']
    #allocation8 [shape = 'u8[65536]{0}', space=vmem, size = 0x10000, scoped, tag = 'input window, operand 5, single buffered']
    #allocation9 [shape = 's32[1]{0}', space=sflag, size = 0x4, scoped, tag = 'scoped memory for tpu_custom_call.1']
    #allocation10 [shape = 'u8[4096]{0}', space=vmem, size = 0x1000, scoped, tag = 'output window, operand 0, single buffered']
    %12 = vsyncpa [#allocation3], 0
    %13 = vsyncpa [#allocation6], 0
    %14 = vsyncpa [#allocation9], 0
    %15 = vsyncpa [#allocation4], 0
    // Predicated region
    $region2: #{tpu_custom_call.1} parent=1 // pred_check
      _
    $region3: #{tpu_custom_call.1} parent=1 // pred_check_branch
      %17 = sbr.rel (0) target = $region5
    $region4: #{tpu_custom_call.1} parent=1 // pred_region
      %s19 = ssub.s32 128, 128
      %20 = vsyncadd [#allocation3], %s19
      %s22 = sshll.u32 [#allocation2], 4
      %s23 = int_to_ptr.vmem [resolvable:$true] %s22
      %25 = dma.hbm_to_vmem [thread:$0]  %s0, 128, %s23, [#allocation3]
    $region5: #{tpu_custom_call.1} parent=1 // pred_fallthru
      _
    // Predicated region
    $region6: #{tpu_custom_call.1} parent=1 // pred_check
      _
    $region7: #{tpu_custom_call.1} parent=1 // pred_check_branch
      %27 = sbr.rel (0) target = $region9
    $region8: #{tpu_custom_call.1} parent=1 // pred_region
      %s29 = ssub.s32 2048, 2048
      %30 = vsyncadd [#allocation6], %s29
      %s31 = sshll.u32 [#allocation5], 4
      %s32 = int_to_ptr.vmem [resolvable:$true] %s31
      %37 = dma.hbm_to_vmem [thread:$0]  %s1, 2048, %s32, [#allocation6], 128, 128, 8
    $region9: #{tpu_custom_call.1} parent=1 // pred_fallthru
      _
    // Predicated region
    $region10: #{tpu_custom_call.1} parent=1 // pred_check
      _
    $region11: #{tpu_custom_call.1} parent=1 // pred_check_branch
      %39 = sbr.rel (0) target = $region13
    $region12: #{tpu_custom_call.1} parent=1 // pred_region
      _
    $region13: #{tpu_custom_call.1} parent=1 // pred_fallthru
      _
    // Predicated region
    $region14: #{tpu_custom_call.1} parent=1 // pred_check
      _
    $region15: #{tpu_custom_call.1} parent=1 // pred_check_branch
      %41 = sbr.rel (0) target = $region17
    $region16: #{tpu_custom_call.1} parent=1 // pred_region
      %s43 = ssub.s32 2048, 2048
      %44 = vsyncadd [#allocation6], %s43
      %s45 = sshll.u32 [#allocation7], 4
      %s46 = int_to_ptr.vmem [resolvable:$true] %s45
      %51 = dma.hbm_to_vmem [thread:$0]  %s3, 2048, %s46, [#allocation6], 128, 128, 8
    $region17: #{tpu_custom_call.1} parent=1 // pred_fallthru
      _
    // Predicated region
    $region18: #{tpu_custom_call.1} parent=1 // pred_check
      _
    $region19: #{tpu_custom_call.1} parent=1 // pred_check_branch
      %53 = sbr.rel (0) target = $region21
    $region20: #{tpu_custom_call.1} parent=1 // pred_region
      _
    $region21: #{tpu_custom_call.1} parent=1 // pred_fallthru
      _
    // Predicated region
    $region22: #{tpu_custom_call.1} parent=1 // pred_check
      _
    $region23: #{tpu_custom_call.1} parent=1 // pred_check_branch
      %55 = sbr.rel (0) target = $region25
    $region24: #{tpu_custom_call.1} parent=1 // pred_region
      %s57 = ssub.s32 2048, 2048
      %58 = vsyncadd [#allocation9], %s57
      %s59 = sshll.u32 [#allocation8], 4
      %s60 = int_to_ptr.vmem [resolvable:$true] %s59
      %65 = dma.hbm_to_vmem [thread:$0]  %s5, 2048, %s60, [#allocation9], 128, 128, 8
    $region25: #{tpu_custom_call.1} parent=1 // pred_fallthru
      _
    // Predicated region
    $region26: #{tpu_custom_call.1} parent=1 // pred_check
      _
    $region27: #{tpu_custom_call.1} parent=1 // pred_check_branch
      %67 = sbr.rel (0) target = $region29
    $region28: #{tpu_custom_call.1} parent=1 // pred_region
      _
    $region29: #{tpu_custom_call.1} parent=1 // pred_fallthru
      _
    // Predicated region
    $region30: #{tpu_custom_call.1} parent=1 // pred_check
      _
    $region31: #{tpu_custom_call.1} parent=1 // pred_check_branch
      %69 = sbr.rel (0) target = $region33
    $region32: #{tpu_custom_call.1} parent=1 // pred_region
      %70 = dma.done [#allocation3], 128
    $region33: #{tpu_custom_call.1} parent=1 // pred_fallthru
      _
    // Predicated region
    $region34: #{tpu_custom_call.1} parent=1 // pred_check
      _
    $region35: #{tpu_custom_call.1} parent=1 // pred_check_branch
      %72 = sbr.rel (0) target = $region37
    $region36: #{tpu_custom_call.1} parent=1 // pred_region
      %73 = dma.done [#allocation6], 2048
    $region37: #{tpu_custom_call.1} parent=1 // pred_fallthru
      _
    // Predicated region
    $region38: #{tpu_custom_call.1} parent=1 // pred_check
      _
    $region39: #{tpu_custom_call.1} parent=1 // pred_check_branch
      %75 = sbr.rel (0) target = $region41
    $region40: #{tpu_custom_call.1} parent=1 // pred_region
      %76 = dma.done [#allocation6], 2048
    $region41: #{tpu_custom_call.1} parent=1 // pred_fallthru
      _
    // Predicated region
    $region42: #{tpu_custom_call.1} parent=1 // pred_check
      _
    $region43: #{tpu_custom_call.1} parent=1 // pred_check_branch
      %78 = sbr.rel (0) target = $region45
    $region44: #{tpu_custom_call.1} parent=1 // pred_region
      %79 = dma.done [#allocation9], 2048
    $region45: #{tpu_custom_call.1} parent=1 // pred_fallthru
      _
    %v80 = vld [vmem:[#allocation2] sm:$0xff]
    %v81 = vld [vmem:[#allocation5] sm:$0xff]
    %v82 = vld [vmem:[#allocation5 + $0x8] sm:$0xff]
    %v83 = vld [vmem:[#allocation5 + $0x10] sm:$0xff]
    %v84 = vld [vmem:[#allocation5 + $0x18] sm:$0xff]
    %v85 = vld [vmem:[#allocation5 + $0x20] sm:$0xff]
    %v86 = vld [vmem:[#allocation5 + $0x28] sm:$0xff]
    %v87 = vld [vmem:[#allocation5 + $0x30] sm:$0xff]
    %v88 = vld [vmem:[#allocation5 + $0x38] sm:$0xff]
    %v89 = vld [vmem:[#allocation5 + $0x40] sm:$0xff]
    %v90 = vld [vmem:[#allocation5 + $0x48] sm:$0xff]
    %v91 = vld [vmem:[#allocation5 + $0x50] sm:$0xff]
    %v92 = vld [vmem:[#allocation5 + $0x58] sm:$0xff]
    %v93 = vld [vmem:[#allocation5 + $0x60] sm:$0xff]
    %v94 = vld [vmem:[#allocation5 + $0x68] sm:$0xff]
    %v95 = vld [vmem:[#allocation5 + $0x70] sm:$0xff]
    %v96 = vld [vmem:[#allocation5 + $0x78] sm:$0xff]
    %v97 = vld [vmem:[%s2] sm:$0x1]
    %v99 = vlaneseq
    %v100 = vshrl.u32 %v99, 7
    %v101 = vsub.s32 0, %v100
    %v102 = vrot.slane %v97, %v101
    %104 = vmatprep.subr.mxu0 0.0
    %105 = vmatpush1.msra.mxu0 %v81
    %106 = vmatprep.subr.mxu0 0.0
    %107 = vmatpush1.msra.mxu0 %v82
    %108 = vmatprep.subr.mxu0 0.0
    %109 = vmatpush1.msra.mxu0 %v83
    %110 = vmatprep.subr.mxu0 0.0
    %111 = vmatpush1.msra.mxu0 %v84
    %112 = vmatprep.subr.mxu0 0.0
    %113 = vmatpush1.msra.mxu0 %v85
    %114 = vmatprep.subr.mxu0 0.0
    %115 = vmatpush1.msra.mxu0 %v86
    %116 = vmatprep.subr.mxu0 0.0
    %117 = vmatpush1.msra.mxu0 %v87
    %118 = vmatprep.subr.mxu0 0.0
    %119 = vmatpush1.msra.mxu0 %v88
    %120 = vmatprep.subr.mxu0 0.0
    %121 = vmatpush1.msra.mxu0 %v89
    %122 = vmatprep.subr.mxu0 0.0
    %123 = vmatpush1.msra.mxu0 %v90
    %124 = vmatprep.subr.mxu0 0.0
    %125 = vmatpush1.msra.mxu0 %v91
    %126 = vmatprep.subr.mxu0 0.0
    %127 = vmatpush1.msra.mxu0 %v92
    %128 = vmatprep.subr.mxu0 0.0
    %129 = vmatpush1.msra.mxu0 %v93
    %130 = vmatprep.subr.mxu0 0.0
    %131 = vmatpush1.msra.mxu0 %v94
    %132 = vmatprep.subr.mxu0 0.0
    %133 = vmatpush1.msra.mxu0 %v95
    %134 = vmatprep.subr.mxu0 0.0
    %135 = vmatpush1.msra.mxu0 %v96
    %136 = vmatprep.subr.mxu0 0.0
    %137 = vmatpush1.msra.mxu0 0.0
    %138 = vmatprep.subr.mxu0 0.0
    %139 = vmatpush1.msra.mxu0 0.0
    %140 = vmatprep.subr.mxu0 0.0
    %141 = vmatpush1.msra.mxu0 0.0
    %142 = vmatprep.subr.mxu0 0.0
    %143 = vmatpush1.msra.mxu0 0.0
    %144 = vmatprep.subr.mxu0 0.0
    %145 = vmatpush1.msra.mxu0 0.0
    %146 = vmatprep.subr.mxu0 0.0
    %147 = vmatpush1.msra.mxu0 0.0
    %148 = vmatprep.subr.mxu0 0.0
    %149 = vmatpush1.msra.mxu0 0.0
    %150 = vmatprep.subr.mxu0 0.0
    %151 = vmatpush1.msra.mxu0 0.0
    %152 = vmatprep.subr.mxu0 0.0
    %153 = vmatpush1.msra.mxu0 0.0
    %154 = vmatprep.subr.mxu0 0.0
    %155 = vmatpush1.msra.mxu0 0.0
    %156 = vmatprep.subr.mxu0 0.0
    %157 = vmatpush1.msra.mxu0 0.0
    %158 = vmatprep.subr.mxu0 0.0
    %159 = vmatpush1.msra.mxu0 0.0
    %160 = vmatprep.subr.mxu0 0.0
    %161 = vmatpush1.msra.mxu0 0.0
    %162 = vmatprep.subr.mxu0 0.0
    %163 = vmatpush1.msra.mxu0 0.0
    %164 = vmatprep.subr.mxu0 0.0
    %165 = vmatpush1.msra.mxu0 0.0
    %166 = vmatprep.subr.mxu0 0.0
    %167 = vmatpush1.msra.mxu0 0.0
    %168 = vmatprep.mubr.f32.mxu0 0.0
    %169 = vmatmul.mubr.f32.gmra.mrb[0].mxu0 %v80
    %v170 = vpop.f32.mrb[0].mxu0
    %v171 = vadd.f32 %v102, %v170
    %v172 = vpop.f32.mrb[0].mxu0
    %173 = vdwg.mxu0
    %v174 = vmin.f32 %v171, 20.0
    %vm175 = vcmp.gt.f32.partialorder %v171, 20.0
    %v176 = vmul.f32 %v174, 1.442695
    %v177 = vpow.pop %v176
    %v178 = vadd.f32 %v177, 1.0
    %v179 = vlog2.pop %v178
    %v180 = vmul.f32 %v179, 0.6931472
    %v181 = vmul.f32 -0.5, %v177
    %v182 = vadd.f32 %v181, 1.0
    %v183 = vmul.f32 %v182, %v177
    %v184 = vand.u32 2147483647, %v177
    %vm185 = vcmp.lt.f32.partialorder %v184, 0.0004427343
    %v186 = vsel %vm185, %v183, %v180
    %v187 = vsel %vm175, %v171, %v186
    %v188 = vld [vmem:[#allocation7] sm:$0xff]
    %v189 = vld [vmem:[#allocation7 + $0x8] sm:$0xff]
    %v190 = vld [vmem:[#allocation7 + $0x10] sm:$0xff]
    %v191 = vld [vmem:[#allocation7 + $0x18] sm:$0xff]
    %v192 = vld [vmem:[#allocation7 + $0x20] sm:$0xff]
    %v193 = vld [vmem:[#allocation7 + $0x28] sm:$0xff]
    %v194 = vld [vmem:[#allocation7 + $0x30] sm:$0xff]
    %v195 = vld [vmem:[#allocation7 + $0x38] sm:$0xff]
    %v196 = vld [vmem:[#allocation7 + $0x40] sm:$0xff]
    %v197 = vld [vmem:[#allocation7 + $0x48] sm:$0xff]
    %v198 = vld [vmem:[#allocation7 + $0x50] sm:$0xff]
    %v199 = vld [vmem:[#allocation7 + $0x58] sm:$0xff]
    %v200 = vld [vmem:[#allocation7 + $0x60] sm:$0xff]
    %v201 = vld [vmem:[#allocation7 + $0x68] sm:$0xff]
    %v202 = vld [vmem:[#allocation7 + $0x70] sm:$0xff]
    %v203 = vld [vmem:[#allocation7 + $0x78] sm:$0xff]
    %v204 = vld [vmem:[%s4] sm:$0x1]
    %v206 = vlaneseq
    %v207 = vshrl.u32 %v206, 7
    %v208 = vsub.s32 0, %v207
    %v209 = vrot.slane %v204, %v208
    %211 = vmatprep.subr.mxu0 0.0
    %212 = vmatpush1.msra.mxu0 %v188
    %213 = vmatprep.subr.mxu0 0.0
    %214 = vmatpush1.msra.mxu0 %v189
    %215 = vmatprep.subr.mxu0 0.0
    %216 = vmatpush1.msra.mxu0 %v190
    %217 = vmatprep.subr.mxu0 0.0
    %218 = vmatpush1.msra.mxu0 %v191
    %219 = vmatprep.subr.mxu0 0.0
    %220 = vmatpush1.msra.mxu0 %v192
    %221 = vmatprep.subr.mxu0 0.0
    %222 = vmatpush1.msra.mxu0 %v193
    %223 = vmatprep.subr.mxu0 0.0
    %224 = vmatpush1.msra.mxu0 %v194
    %225 = vmatprep.subr.mxu0 0.0
    %226 = vmatpush1.msra.mxu0 %v195
    %227 = vmatprep.subr.mxu0 0.0
    %228 = vmatpush1.msra.mxu0 %v196
    %229 = vmatprep.subr.mxu0 0.0
    %230 = vmatpush1.msra.mxu0 %v197
    %231 = vmatprep.subr.mxu0 0.0
    %232 = vmatpush1.msra.mxu0 %v198
    %233 = vmatprep.subr.mxu0 0.0
    %234 = vmatpush1.msra.mxu0 %v199
    %235 = vmatprep.subr.mxu0 0.0
    %236 = vmatpush1.msra.mxu0 %v200
    %237 = vmatprep.subr.mxu0 0.0
    %238 = vmatpush1.msra.mxu0 %v201
    %239 = vmatprep.subr.mxu0 0.0
    %240 = vmatpush1.msra.mxu0 %v202
    %241 = vmatprep.subr.mxu0 0.0
    %242 = vmatpush1.msra.mxu0 %v203
    %243 = vmatprep.subr.mxu0 0.0
    %244 = vmatpush1.msra.mxu0 0.0
    %245 = vmatprep.subr.mxu0 0.0
    %246 = vmatpush1.msra.mxu0 0.0
    %247 = vmatprep.subr.mxu0 0.0
    %248 = vmatpush1.msra.mxu0 0.0
    %249 = vmatprep.subr.mxu0 0.0
    %250 = vmatpush1.msra.mxu0 0.0
    %251 = vmatprep.subr.mxu0 0.0
    %252 = vmatpush1.msra.mxu0 0.0
    %253 = vmatprep.subr.mxu0 0.0
    %254 = vmatpush1.msra.mxu0 0.0
    %255 = vmatprep.subr.mxu0 0.0
    %256 = vmatpush1.msra.mxu0 0.0
    %257 = vmatprep.subr.mxu0 0.0
    %258 = vmatpush1.msra.mxu0 0.0
    %259 = vmatprep.subr.mxu0 0.0
    %260 = vmatpush1.msra.mxu0 0.0
    %261 = vmatprep.subr.mxu0 0.0
    %262 = vmatpush1.msra.mxu0 0.0
    %263 = vmatprep.subr.mxu0 0.0
    %264 = vmatpush1.msra.mxu0 0.0
    %265 = vmatprep.subr.mxu0 0.0
    %266 = vmatpush1.msra.mxu0 0.0
    %267 = vmatprep.subr.mxu0 0.0
    %268 = vmatpush1.msra.mxu0 0.0
    %269 = vmatprep.subr.mxu0 0.0
    %270 = vmatpush1.msra.mxu0 0.0
    %271 = vmatprep.subr.mxu0 0.0
    %272 = vmatpush1.msra.mxu0 0.0
    %273 = vmatprep.subr.mxu0 0.0
    %274 = vmatpush1.msra.mxu0 0.0
    %275 = vmatprep.mubr.f32.mxu0 0.0
    %276 = vmatmul.mubr.f32.gmra.mrb[0].mxu0 %v187
    %v277 = vpop.f32.mrb[0].mxu0
    %v278 = vadd.f32 %v209, %v277
    %v279 = vpop.f32.mrb[0].mxu0
    %280 = vdwg.mxu0
    %v281 = vmin.f32 %v278, 20.0
    %vm282 = vcmp.gt.f32.partialorder %v278, 20.0
    %v283 = vmul.f32 %v281, 1.442695
    %v284 = vpow.pop %v283
    %v285 = vadd.f32 %v284, 1.0
    %v286 = vlog2.pop %v285
    %v287 = vmul.f32 %v286, 0.6931472
    %v288 = vmul.f32 -0.5, %v284
    %v289 = vadd.f32 %v288, 1.0
    %v290 = vmul.f32 %v289, %v284
    %v291 = vand.u32 2147483647, %v284
    %vm292 = vcmp.lt.f32.partialorder %v291, 0.0004427343
    %v293 = vsel %vm292, %v290, %v287
    %v294 = vsel %vm282, %v278, %v293
    %v295 = vld [vmem:[#allocation8] sm:$0xff]
    %v296 = vld [vmem:[#allocation8 + $0x8] sm:$0xff]
    %v297 = vld [vmem:[#allocation8 + $0x10] sm:$0xff]
    %v298 = vld [vmem:[#allocation8 + $0x18] sm:$0xff]
    %v299 = vld [vmem:[#allocation8 + $0x20] sm:$0xff]
    %v300 = vld [vmem:[#allocation8 + $0x28] sm:$0xff]
    %v301 = vld [vmem:[#allocation8 + $0x30] sm:$0xff]
    %v302 = vld [vmem:[#allocation8 + $0x38] sm:$0xff]
    %v303 = vld [vmem:[#allocation8 + $0x40] sm:$0xff]
    %v304 = vld [vmem:[#allocation8 + $0x48] sm:$0xff]
    %v305 = vld [vmem:[#allocation8 + $0x50] sm:$0xff]
    %v306 = vld [vmem:[#allocation8 + $0x58] sm:$0xff]
    %v307 = vld [vmem:[#allocation8 + $0x60] sm:$0xff]
    %v308 = vld [vmem:[#allocation8 + $0x68] sm:$0xff]
    %v309 = vld [vmem:[#allocation8 + $0x70] sm:$0xff]
    %v310 = vld [vmem:[#allocation8 + $0x78] sm:$0xff]
    %v311 = vld [vmem:[%s6] sm:$0x1]
    %v313 = vlaneseq
    %v314 = vshrl.u32 %v313, 7
    %v315 = vsub.s32 0, %v314
    %v316 = vrot.slane %v311, %v315
    %318 = vmatprep.subr.mxu0 0.0
    %319 = vmatpush1.msra.mxu0 %v295
    %320 = vmatprep.subr.mxu0 0.0
    %321 = vmatpush1.msra.mxu0 %v296
    %322 = vmatprep.subr.mxu0 0.0
    %323 = vmatpush1.msra.mxu0 %v297
    %324 = vmatprep.subr.mxu0 0.0
    %325 = vmatpush1.msra.mxu0 %v298
    %326 = vmatprep.subr.mxu0 0.0
    %327 = vmatpush1.msra.mxu0 %v299
    %328 = vmatprep.subr.mxu0 0.0
    %329 = vmatpush1.msra.mxu0 %v300
    %330 = vmatprep.subr.mxu0 0.0
    %331 = vmatpush1.msra.mxu0 %v301
    %332 = vmatprep.subr.mxu0 0.0
    %333 = vmatpush1.msra.mxu0 %v302
    %334 = vmatprep.subr.mxu0 0.0
    %335 = vmatpush1.msra.mxu0 %v303
    %336 = vmatprep.subr.mxu0 0.0
    %337 = vmatpush1.msra.mxu0 %v304
    %338 = vmatprep.subr.mxu0 0.0
    %339 = vmatpush1.msra.mxu0 %v305
    %340 = vmatprep.subr.mxu0 0.0
    %341 = vmatpush1.msra.mxu0 %v306
    %342 = vmatprep.subr.mxu0 0.0
    %343 = vmatpush1.msra.mxu0 %v307
    %344 = vmatprep.subr.mxu0 0.0
    %345 = vmatpush1.msra.mxu0 %v308
    %346 = vmatprep.subr.mxu0 0.0
    %347 = vmatpush1.msra.mxu0 %v309
    %348 = vmatprep.subr.mxu0 0.0
    %349 = vmatpush1.msra.mxu0 %v310
    %350 = vmatprep.subr.mxu0 0.0
    %351 = vmatpush1.msra.mxu0 0.0
    %352 = vmatprep.subr.mxu0 0.0
    %353 = vmatpush1.msra.mxu0 0.0
    %354 = vmatprep.subr.mxu0 0.0
    %355 = vmatpush1.msra.mxu0 0.0
    %356 = vmatprep.subr.mxu0 0.0
    %357 = vmatpush1.msra.mxu0 0.0
    %358 = vmatprep.subr.mxu0 0.0
    %359 = vmatpush1.msra.mxu0 0.0
    %360 = vmatprep.subr.mxu0 0.0
    %361 = vmatpush1.msra.mxu0 0.0
    %362 = vmatprep.subr.mxu0 0.0
    %363 = vmatpush1.msra.mxu0 0.0
    %364 = vmatprep.subr.mxu0 0.0
    %365 = vmatpush1.msra.mxu0 0.0
    %366 = vmatprep.subr.mxu0 0.0
    %367 = vmatpush1.msra.mxu0 0.0
    %368 = vmatprep.subr.mxu0 0.0
    %369 = vmatpush1.msra.mxu0 0.0
    %370 = vmatprep.subr.mxu0 0.0
    %371 = vmatpush1.msra.mxu0 0.0
    %372 = vmatprep.subr.mxu0 0.0
    %373 = vmatpush1.msra.mxu0 0.0
    %374 = vmatprep.subr.mxu0 0.0
    %375 = vmatpush1.msra.mxu0 0.0
    %376 = vmatprep.subr.mxu0 0.0
    %377 = vmatpush1.msra.mxu0 0.0
    %378 = vmatprep.subr.mxu0 0.0
    %379 = vmatpush1.msra.mxu0 0.0
    %380 = vmatprep.subr.mxu0 0.0
    %381 = vmatpush1.msra.mxu0 0.0
    %382 = vmatprep.mubr.f32.mxu0 0.0
    %383 = vmatmul.mubr.f32.gmra.mrb[0].mxu0 %v294
    %v384 = vpop.f32.mrb[0].mxu0
    %v385 = vadd.f32 %v316, %v384
    %v386 = vpop.f32.mrb[0].mxu0
    %387 = vdwg.mxu0
    %v388 = vrot.slane %v385, 4
    %v389 = vadd.f32 %v385, %v388
    %v390 = vrot.slane %v389, 2
    %v391 = vadd.f32 %v389, %v390
    %v392 = vrot.slane %v391, 1
    %v393 = vadd.f32 %v391, %v392
    %v394 = vrcp.pop 8.0
    %v395 = vmul.f32 %v393, %v394
    %v396 = vsub.f32 %v385, %v395
    %v397 = vmul.f32 %v396, %v396
    %v398 = vrot.slane %v397, 4
    %v399 = vadd.f32 %v397, %v398
    %v400 = vrot.slane %v399, 2
    %v401 = vadd.f32 %v399, %v400
    %v402 = vrot.slane %v401, 1
    %v403 = vadd.f32 %v401, %v402
    %v404 = vmul.f32 %v403, %v394
    %v405 = vadd.f32 %v404, 1e-05
    %v406 = vrsqrt.pop %v405
    %v407 = vmul.f32 %v396, %v406
    %408 = vst [vmem:[#allocation10] sm:$0xff] %v407
    // Predicated region
    $region46: #{tpu_custom_call.1} parent=1 // pred_check
      _
    $region47: #{tpu_custom_call.1} parent=1 // pred_check_branch
      %410 = sbr.rel (0) target = $region49
    $region48: #{tpu_custom_call.1} parent=1 // pred_region
      %s412 = ssub.s32 128, 128
      %413 = vsyncadd [#allocation4], %s412
      %s415 = sshll.u32 [#allocation10], 4
      %s416 = int_to_ptr.vmem [resolvable:$true] %s415
      %418 = dma.vmem_to_hbm [thread:$0]  %s416, 128, %s7, [#allocation4]
    $region49: #{tpu_custom_call.1} parent=1 // pred_fallthru
      _
    // Predicated region
    $region50: #{tpu_custom_call.1} parent=1 // pred_check
      _
    $region51: #{tpu_custom_call.1} parent=1 // pred_check_branch
      %420 = sbr.rel (0) target = $region53
    $region52: #{tpu_custom_call.1} parent=1 // pred_region
      %421 = dma.done [#allocation4], 128
    $region53: #{tpu_custom_call.1} parent=1 // pred_fallthru
      _
    %422 = vsyncpa [#allocation3], 1
    %423 = vsyncpa [#allocation6], 1
    %424 = vsyncpa [#allocation9], 1
    %425 = vsyncpa [#allocation4], 1

</llo_original>
